<compile_context>
chip_gen: v5e
topology: v5e:2x2
jax: 0.10.0
libtpu: 0.0.40
codegen_flags: <defaults>
</compile_context>

<pallas_src>
import jax
import jax.numpy as jnp
from jax.experimental import pallas as pl
from jax.experimental.pallas import tpu as pltpu

EMBEDDING_SIZE = 384
HIDDEN = 50
HIDDEN_PACKED = 3 * HIDDEN          # 150 (concatenated hidden units)
HIDDEN_PAD = 256                    # lane-dense padding of the packed hidden dim
NUM_CLASSES_INTENT = 4
NUM_CLASSES_DOMAIN = 2
NUM_CLASSES_HITL = 2
OUT_TOTAL = NUM_CLASSES_INTENT + NUM_CLASSES_DOMAIN + NUM_CLASSES_HITL  # 8

SUBLANE = 16                        # bf16 sublane packing (also a multiple of 8 for f32)
MAX_TILE_B = 4096                   # big tile to amortize per-grid-step overhead
VMEM_LIMIT_BYTES = 32 * 1024 * 1024 # needed on v5e beyond its 16 MiB scoped default


def _round_up(n, m):
    return ((n + m - 1) // m) * m


def _is_v7x_megacore():
    """Detect a 2-TensorCore (v7x-class) chip; default to the safe single-TC path."""
    try:
        kind = jax.devices()[0].device_kind.lower()
        return "v7" in kind
    except Exception:
        return False


def _multihead_kernel(x_ref, w1_ref, b1_ref, w2_ref, b2_ref, o_ref):
    """Fused forward for all three heads on one batch tile."""
    x = x_ref[...]
    if x.dtype != jnp.bfloat16:          # no-op when the caller already feeds bf16
        x = x.astype(jnp.bfloat16)
    # Layer 1: bf16 MXU matmul, f32 accumulate, fused bias + ReLU.
    h = jnp.dot(x, w1_ref[...], preferred_element_type=jnp.float32)
    h = jnp.maximum(h + b1_ref[...], 0.0)
    # Layer 2: block-diagonal packed weights (bf16 MXU) -> one [tile_b, 8] output.
    o = jnp.dot(h.astype(jnp.bfloat16), w2_ref[...],
                preferred_element_type=jnp.float32) + b2_ref[...]
    o_ref[...] = o.astype(o_ref.dtype)


def pack_params(params):
    """Pack per-head params into the fused layout consumed by the kernel."""
    w1 = jnp.concatenate([params["wi1"], params["wd1"], params["wh1"]], axis=1)
    w1 = jnp.pad(w1, ((0, 0), (0, HIDDEN_PAD - HIDDEN_PACKED)))
    w1 = w1.astype(jnp.bfloat16)                                   # [384, 256] bf16

    b1 = jnp.concatenate([params["bi1"], params["bd1"], params["bh1"]], axis=1)
    b1 = jnp.pad(b1, ((0, 0), (0, HIDDEN_PAD - HIDDEN_PACKED)))    # [1, 256] f32

    w2 = jnp.zeros((HIDDEN_PAD, OUT_TOTAL), jnp.float32)           # block-diagonal
    w2 = w2.at[0:HIDDEN, 0:4].set(params["wi2"])
    w2 = w2.at[HIDDEN:2 * HIDDEN, 4:6].set(params["wd2"])
    w2 = w2.at[2 * HIDDEN:3 * HIDDEN, 6:8].set(params["wh2"])
    w2 = w2.astype(jnp.bfloat16)                                   # [256, 8] bf16

    b2 = jnp.concatenate([params["bi2"], params["bd2"], params["bh2"]], axis=1)  # [1, 8] f32
    return dict(w1=w1, b1=b1, w2=w2, b2=b2)


def multihead_classifier_forward(x, packed, tile_b_max=MAX_TILE_B):
    """x: [B, 384] (bf16 preferred, f32 accepted). Returns dict of 3 logit arrays."""
    B = x.shape[0]
    megacore = _is_v7x_megacore()

    # Tile only as much as the batch needs; no padding up to a tile multiple —
    # Pallas masks the ragged last block on write.
    tile_b = min(tile_b_max, _round_up(B, SUBLANE))
    if megacore and B > SUBLANE:
        # Ensure >=2 grid steps so CORE_PARALLEL can split the batch across TCs.
        tile_b = min(tile_b, _round_up((B + 1) // 2, SUBLANE))

    grid = (pl.cdiv(B, tile_b),)

    def run(dim_sem):
        return pl.pallas_call(
            _multihead_kernel,
            out_shape=jax.ShapeDtypeStruct((B, OUT_TOTAL), jnp.float32),
            grid=grid,
            in_specs=[
                pl.BlockSpec((tile_b, EMBEDDING_SIZE), lambda i: (i, 0)),      # x tile
                pl.BlockSpec((EMBEDDING_SIZE, HIDDEN_PAD), lambda i: (0, 0)),  # W1 (resident)
                pl.BlockSpec((1, HIDDEN_PAD), lambda i: (0, 0)),               # b1 (resident)
                pl.BlockSpec((HIDDEN_PAD, OUT_TOTAL), lambda i: (0, 0)),       # W2 (resident)
                pl.BlockSpec((1, OUT_TOTAL), lambda i: (0, 0)),                # b2 (resident)
            ],
            out_specs=pl.BlockSpec((tile_b, OUT_TOTAL), lambda i: (i, 0)),
            compiler_params=pltpu.CompilerParams(
                dimension_semantics=dim_sem,
                vmem_limit_bytes=VMEM_LIMIT_BYTES,
            ),
        )(x, packed["w1"], packed["b1"], packed["w2"], packed["b2"])

    core_parallel = getattr(pltpu, "CORE_PARALLEL", None)
    if megacore and core_parallel is not None:
        try:
            out = run((core_parallel,))
        except Exception:               # safe fallback if CORE_PARALLEL is rejected
            out = run(("parallel",))
    else:
        out = run(("parallel",))

    logits_intent = out[:, 0:NUM_CLASSES_INTENT]
    logits_domain = out[:, NUM_CLASSES_INTENT:NUM_CLASSES_INTENT + NUM_CLASSES_DOMAIN]
    logits_hitl = out[:, NUM_CLASSES_INTENT + NUM_CLASSES_DOMAIN:OUT_TOTAL]
    return {"logits": (logits_intent, logits_domain, logits_hitl)}


def init_params(key):
    """PyTorch nn.Linear-style init (U[-1/sqrt(fan_in), +1/sqrt(fan_in)]),
    weights stored as [in, out]."""
    def linear(key, fan_in, fan_out):
        kw, kb = jax.random.split(key)
        bound = 1.0 / jnp.sqrt(jnp.float32(fan_in))
        w = jax.random.uniform(kw, (fan_in, fan_out), jnp.float32, -bound, bound)
        b = jax.random.uniform(kb, (1, fan_out), jnp.float32, -bound, bound)
        return w, b

    keys = jax.random.split(key, 6)
    wi1, bi1 = linear(keys[0], EMBEDDING_SIZE, HIDDEN)
    wi2, bi2 = linear(keys[1], HIDDEN, NUM_CLASSES_INTENT)
    wd1, bd1 = linear(keys[2], EMBEDDING_SIZE, HIDDEN)
    wd2, bd2 = linear(keys[3], HIDDEN, NUM_CLASSES_DOMAIN)
    wh1, bh1 = linear(keys[4], EMBEDDING_SIZE, HIDDEN)
    wh2, bh2 = linear(keys[5], HIDDEN, NUM_CLASSES_HITL)
    return dict(wi1=wi1, bi1=bi1, wi2=wi2, bi2=bi2,
                wd1=wd1, bd1=bd1, wd2=wd2, bd2=bd2,
                wh1=wh1, bh1=bh1, wh2=wh2, bh2=bh2)


def _reference_forward(x, p):
    """Pure-JAX per-head reference mirroring the kernel numerics
    (bf16 quantization of x, W1, h, W2; f32 accumulation everywhere)."""
    xb = x.astype(jnp.bfloat16).astype(jnp.float32)

    def head(w1, b1, w2, b2):
        w1b = w1.astype(jnp.bfloat16).astype(jnp.float32)
        h = jnp.maximum(xb @ w1b + b1, 0.0)
        hb = h.astype(jnp.bfloat16).astype(jnp.float32)
        w2b = w2.astype(jnp.bfloat16).astype(jnp.float32)
        return hb @ w2b + b2

    return (head(p["wi1"], p["bi1"], p["wi2"], p["bi2"]),
            head(p["wd1"], p["bd1"], p["wd2"], p["bd2"]),
            head(p["wh1"], p["bh1"], p["wh2"], p["bh2"]))


if __name__ == "__main__":
    key = jax.random.PRNGKey(0)
    k_params, k_x = jax.random.split(key)

    params = init_params(k_params)
    packed = pack_params(params)

    batch = 8
    # Upstream embedding producer emits bf16 (halves the dominant HBM stream);
    # the wrapper also accepts f32 transparently.
    x = jax.random.normal(k_x, (batch, EMBEDDING_SIZE), jnp.float32).astype(jnp.bfloat16)

    out = multihead_classifier_forward(x, packed)
    logits_intent, logits_domain, logits_hitl = out["logits"]
    jax.block_until_ready((logits_intent, logits_domain, logits_hitl))

    # Correctness check against a pure-JAX reference with matching numerics.
    ref_i, ref_d, ref_h = _reference_forward(x, params)
    assert logits_intent.shape == (batch, NUM_CLASSES_INTENT)
    assert logits_domain.shape == (batch, NUM_CLASSES_DOMAIN)
    assert logits_hitl.shape == (batch, NUM_CLASSES_HITL)
    assert jnp.allclose(logits_intent, ref_i, atol=2e-3, rtol=2e-3)
    assert jnp.allclose(logits_domain, ref_d, atol=2e-3, rtol=2e-3)
    assert jnp.allclose(logits_hitl, ref_h, atol=2e-3, rtol=2e-3)

    print("KERNEL_OK")
</pallas_src>

<mosaic_0001>
module attributes {stable_mosaic.version = 11 : i64} {
  func.func @_multihead_kernel(%arg0: i32, %arg1: memref<16x384xbf16, #tpu.memory_space<vmem>>, %arg2: memref<384x256xbf16, #tpu.memory_space<vmem>>, %arg3: memref<1x256xf32, #tpu.memory_space<vmem>>, %arg4: memref<256x8xbf16, #tpu.memory_space<vmem>>, %arg5: memref<1x8xf32, #tpu.memory_space<vmem>>, %arg6: memref<16x8xf32, #tpu.memory_space<vmem>>) attributes {dimension_semantics = [#tpu.dimension_semantics<parallel>], iteration_bounds = array<i64: 1>, scalar_prefetch = 0 : i64, scratch_operands = 0 : i64, tpu.core_type = #tpu.core_type<tc>, window_params = [{transform_indices = @transform_0, window_bounds = array<i64: 16, 384>}, {pipeline_mode = #tpu.pipeline_mode<synchronous>, transform_indices = @transform_1, window_bounds = array<i64: 384, 256>}, {pipeline_mode = #tpu.pipeline_mode<synchronous>, transform_indices = @transform_2, window_bounds = array<i64: 1, 256>}, {pipeline_mode = #tpu.pipeline_mode<synchronous>, transform_indices = @transform_3, window_bounds = array<i64: 256, 8>}, {pipeline_mode = #tpu.pipeline_mode<synchronous>, transform_indices = @transform_4, window_bounds = array<i64: 1, 8>}, {transform_indices = @transform_5, window_bounds = array<i64: 16, 8>}]} {
    %c0 = arith.constant 0 : index
    %c0_0 = arith.constant 0 : index
    %0 = vector.load %arg1[%c0, %c0_0] : memref<16x384xbf16, #tpu.memory_space<vmem>>, vector<16x384xbf16>
    %c0_1 = arith.constant 0 : index
    %c0_2 = arith.constant 0 : index
    %1 = vector.load %arg2[%c0_1, %c0_2] : memref<384x256xbf16, #tpu.memory_space<vmem>>, vector<384x256xbf16>
    %cst = arith.constant dense<0.000000e+00> : vector<16x256xf32>
    %2 = tpu.matmul %0, %1, %cst {dimension_numbers = #tpu.dot_dimension_numbers<[1], [0], [0], [1], [0, 0, 1, 1], [], []>} : vector<16x384xbf16>, vector<384x256xbf16>, vector<16x256xf32> -> vector<16x256xf32>
    %c0_3 = arith.constant 0 : index
    %c0_4 = arith.constant 0 : index
    %3 = vector.load %arg3[%c0_3, %c0_4] : memref<1x256xf32, #tpu.memory_space<vmem>>, vector<1x256xf32>
    %4 = vector.broadcast %3 : vector<1x256xf32> to vector<16x256xf32>
    %5 = arith.addf %2, %4 : vector<16x256xf32>
    %cst_5 = arith.constant 0.000000e+00 : f32
    %6 = vector.broadcast %cst_5 : f32 to vector<16x256xf32>
    %7 = arith.maximumf %5, %6 : vector<16x256xf32>
    %8 = arith.truncf %7 : vector<16x256xf32> to vector<16x256xbf16>
    %c0_6 = arith.constant 0 : index
    %c0_7 = arith.constant 0 : index
    %9 = vector.load %arg4[%c0_6, %c0_7] : memref<256x8xbf16, #tpu.memory_space<vmem>>, vector<256x8xbf16>
    %cst_8 = arith.constant dense<0.000000e+00> : vector<16x8xf32>
    %10 = tpu.matmul %8, %9, %cst_8 {dimension_numbers = #tpu.dot_dimension_numbers<[1], [0], [0], [1], [0, 0, 1, 1], [], []>} : vector<16x256xbf16>, vector<256x8xbf16>, vector<16x8xf32> -> vector<16x8xf32>
    %c0_9 = arith.constant 0 : index
    %c0_10 = arith.constant 0 : index
    %11 = vector.load %arg5[%c0_9, %c0_10] : memref<1x8xf32, #tpu.memory_space<vmem>>, vector<1x8xf32>
    %12 = vector.broadcast %11 : vector<1x8xf32> to vector<16x8xf32>
    %13 = arith.addf %10, %12 : vector<16x8xf32>
    %c0_11 = arith.constant 0 : index
    %c0_12 = arith.constant 0 : index
    %14 = vector.load %arg6[%c0_11, %c0_12] : memref<16x8xf32, #tpu.memory_space<vmem>>, vector<16x8xf32>
    tpu.vector_store %arg6[%c0_11, %c0_12], %13 {strides = array<i32>} : memref<16x8xf32, #tpu.memory_space<vmem>>, vector<16x8xf32>,
    return
  }
  func.func @transform_0(%arg0: i32) -> (i32, i32) {
    %c0_i32 = arith.constant 0 : i32
    %c0_i32_0 = arith.constant 0 : i32
    return %arg0, %c0_i32 : i32, i32
  }
  func.func @transform_1(%arg0: i32) -> (i32, i32) {
    %c0_i32 = arith.constant 0 : i32
    %c0_i32_0 = arith.constant 0 : i32
    %c0_i32_1 = arith.constant 0 : i32
    return %c0_i32, %c0_i32_0 : i32, i32
  }
  func.func @transform_2(%arg0: i32) -> (i32, i32) {
    %c0_i32 = arith.constant 0 : i32
    %c0_i32_0 = arith.constant 0 : i32
    %c0_i32_1 = arith.constant 0 : i32
    return %c0_i32, %c0_i32_0 : i32, i32
  }
  func.func @transform_3(%arg0: i32) -> (i32, i32) {
    %c0_i32 = arith.constant 0 : i32
    %c0_i32_0 = arith.constant 0 : i32
    %c0_i32_1 = arith.constant 0 : i32
    return %c0_i32, %c0_i32_0 : i32, i32
  }
  func.func @transform_4(%arg0: i32) -> (i32, i32) {
    %c0_i32 = arith.constant 0 : i32
    %c0_i32_0 = arith.constant 0 : i32
    %c0_i32_1 = arith.constant 0 : i32
    return %c0_i32, %c0_i32_0 : i32, i32
  }
  func.func @transform_5(%arg0: i32) -> (i32, i32) {
    %c0_i32 = arith.constant 0 : i32
    %c0_i32_0 = arith.constant 0 : i32
    return %arg0, %c0_i32 : i32, i32
  }
}

</mosaic_0001>

<llo_original>
// kernel: tpu_custom_call.1
$region0: #{tpu_custom_call.1}
  #allocation0 [shape = 'u32[]', space=smem, size = 0x4, offset = 0x4, fixed_abs, tag = 'smem constant byte address 0x4 - core index']
  #allocation1 [shape = 'u32[72,128]{1,0:T(1,128)}', space=vmem, size = 0x9000, scoped, tag = 'internal scratch']
  %s0 = inlined_call_operand.vmem [shape: bf16[8,384], index: 0, kind: input, shape index: {}]
  %s1 = inlined_call_operand.hbm [shape: bf16[384,256], index: 1, kind: input, shape index: {}]
  %s2 = inlined_call_operand.vmem [shape: f32[1,256], index: 2, kind: input, shape index: {}]
  %s3 = inlined_call_operand.vmem [shape: bf16[256,8], index: 3, kind: input, shape index: {}]
  %s4 = inlined_call_operand.vmem [shape: f32[1,8], index: 4, kind: input, shape index: {}]
  %s5 = inlined_call_operand.hbm [shape: f32[8,8], index: 5, kind: output, shape index: {}]
  %s6 = sld [smem:[#allocation0]]
  $region34: #{tpu_custom_call.1} parent=0
    _
  %s8 = ssub.s32 1, %s6
  %s9 = scalar_select 0, %s8, %s6
  $region1: #{tpu_custom_call.1} parent=0
    #allocation2 [shape = 'u8[196608]{0}', space=vmem, size = 0x30000, scoped, tag = 'input window, operand 1, single buffered']
    #allocation3 [shape = 's32[1]{0}', space=sflag, size = 0x4, scoped, tag = 'scoped memory for tpu_custom_call.1']
    #allocation4 [shape = 's32[1]{0}', space=sflag, size = 0x4, scoped, tag = 'scoped memory for tpu_custom_call.1']
    #allocation5 [shape = 'u8[8192]{0}', space=vmem, size = 0x2000, scoped, tag = 'output window, operand 0, single buffered']
    %10 = vsyncpa [#allocation3], 0
    %11 = vsyncpa [#allocation4], 0
    // Predicated region
    $region2: #{tpu_custom_call.1} parent=1 // pred_check
      _
    $region3: #{tpu_custom_call.1} parent=1 // pred_check_branch
      %13 = sbr.rel (0) target = $region5
    $region4: #{tpu_custom_call.1} parent=1 // pred_region
      _
    $region5: #{tpu_custom_call.1} parent=1 // pred_fallthru
      _
    // Predicated region
    $region6: #{tpu_custom_call.1} parent=1 // pred_check
      _
    $region7: #{tpu_custom_call.1} parent=1 // pred_check_branch
      %15 = sbr.rel (0) target = $region9
    $region8: #{tpu_custom_call.1} parent=1 // pred_region
      %17 = vsyncadd [#allocation3], 0
      %s18 = sshll.u32 %s1, 4
      %s19 = int_to_ptr.hbm [resolvable:$true] %s18
      %s20 = sshll.u32 [#allocation2], 4
      %s21 = int_to_ptr.vmem [resolvable:$true] %s20
      %26 = dma.hbm_to_vmem [thread:$0]  %s19, 6144, %s21, [#allocation3], 128, 128, 8
    $region9: #{tpu_custom_call.1} parent=1 // pred_fallthru
      _
    // Predicated region
    $region10: #{tpu_custom_call.1} parent=1 // pred_check
      _
    $region11: #{tpu_custom_call.1} parent=1 // pred_check_branch
      %28 = sbr.rel (0) target = $region13
    $region12: #{tpu_custom_call.1} parent=1 // pred_region
      _
    $region13: #{tpu_custom_call.1} parent=1 // pred_fallthru
      _
    // Predicated region
    $region14: #{tpu_custom_call.1} parent=1 // pred_check
      _
    $region15: #{tpu_custom_call.1} parent=1 // pred_check_branch
      %30 = sbr.rel (0) target = $region17
    $region16: #{tpu_custom_call.1} parent=1 // pred_region
      _
    $region17: #{tpu_custom_call.1} parent=1 // pred_fallthru
      _
    // Predicated region
    $region18: #{tpu_custom_call.1} parent=1 // pred_check
      _
    $region19: #{tpu_custom_call.1} parent=1 // pred_check_branch
      %32 = sbr.rel (0) target = $region21
    $region20: #{tpu_custom_call.1} parent=1 // pred_region
      _
    $region21: #{tpu_custom_call.1} parent=1 // pred_fallthru
      _
    // Predicated region
    $region22: #{tpu_custom_call.1} parent=1 // pred_check
      _
    $region23: #{tpu_custom_call.1} parent=1 // pred_check_branch
      %34 = sbr.rel (0) target = $region25
    $region24: #{tpu_custom_call.1} parent=1 // pred_region
      %36 = dma.done [#allocation3], 6144
    $region25: #{tpu_custom_call.1} parent=1 // pred_fallthru
      _
    %v37 = vld [vmem:[%s0] sm:$0xff]
    %v38 = vld [vmem:[%s0 + $0x8] sm:$0xf]
    %v39 = vld [vmem:[%s0 + $0xc] sm:$0xff]
    %v40 = vld [vmem:[%s0 + $0x14] sm:$0xf]
    %v41 = vld [vmem:[#allocation2] sm:$0xff]
    %v42 = vld [vmem:[#allocation2 + $0x8] sm:$0xff]
    %v43 = vld [vmem:[#allocation2 + $0x10] sm:$0xff]
    %v44 = vld [vmem:[#allocation2 + $0x18] sm:$0xff]
    %v45 = vld [vmem:[#allocation2 + $0x20] sm:$0xff]
    %v46 = vld [vmem:[#allocation2 + $0x28] sm:$0xff]
    %v47 = vld [vmem:[#allocation2 + $0x30] sm:$0xff]
    %v48 = vld [vmem:[#allocation2 + $0x38] sm:$0xff]
    %v49 = vld [vmem:[#allocation2 + $0x40] sm:$0xff]
    %v50 = vld [vmem:[#allocation2 + $0x48] sm:$0xff]
    %v51 = vld [vmem:[#allocation2 + $0x50] sm:$0xff]
    %v52 = vld [vmem:[#allocation2 + $0x58] sm:$0xff]
    %v53 = vld [vmem:[#allocation2 + $0x60] sm:$0xff]
    %v54 = vld [vmem:[#allocation2 + $0x68] sm:$0xff]
    %v55 = vld [vmem:[#allocation2 + $0x70] sm:$0xff]
    %v56 = vld [vmem:[#allocation2 + $0x78] sm:$0xff]
    %v57 = vld [vmem:[#allocation2 + $0x80] sm:$0xff]
    %v58 = vld [vmem:[#allocation2 + $0x88] sm:$0xff]
    %v59 = vld [vmem:[#allocation2 + $0x90] sm:$0xff]
    %v60 = vld [vmem:[#allocation2 + $0x98] sm:$0xff]
    %v61 = vld [vmem:[#allocation2 + $0xa0] sm:$0xff]
    %v62 = vld [vmem:[#allocation2 + $0xa8] sm:$0xff]
    %v63 = vld [vmem:[#allocation2 + $0xb0] sm:$0xff]
    %v64 = vld [vmem:[#allocation2 + $0xb8] sm:$0xff]
    %v65 = vld [vmem:[#allocation2 + $0xc0] sm:$0xff]
    %v66 = vld [vmem:[#allocation2 + $0xc8] sm:$0xff]
    %v67 = vld [vmem:[#allocation2 + $0xd0] sm:$0xff]
    %v68 = vld [vmem:[#allocation2 + $0xd8] sm:$0xff]
    %v69 = vld [vmem:[#allocation2 + $0xe0] sm:$0xff]
    %v70 = vld [vmem:[#allocation2 + $0xe8] sm:$0xff]
    %v71 = vld [vmem:[#allocation2 + $0xf0] sm:$0xff]
    %v72 = vld [vmem:[#allocation2 + $0xf8] sm:$0xff]
    %v73 = vld [vmem:[#allocation2 + $0x100] sm:$0xff]
    %v74 = vld [vmem:[#allocation2 + $0x108] sm:$0xff]
    %v75 = vld [vmem:[#allocation2 + $0x110] sm:$0xff]
    %v76 = vld [vmem:[#allocation2 + $0x118] sm:$0xff]
    %v77 = vld [vmem:[#allocation2 + $0x120] sm:$0xff]
    %v78 = vld [vmem:[#allocation2 + $0x128] sm:$0xff]
    %v79 = vld [vmem:[#allocation2 + $0x130] sm:$0xff]
    %v80 = vld [vmem:[#allocation2 + $0x138] sm:$0xff]
    %v81 = vld [vmem:[#allocation2 + $0x140] sm:$0xff]
    %v82 = vld [vmem:[#allocation2 + $0x148] sm:$0xff]
    %v83 = vld [vmem:[#allocation2 + $0x150] sm:$0xff]
    %v84 = vld [vmem:[#allocation2 + $0x158] sm:$0xff]
    %v85 = vld [vmem:[#allocation2 + $0x160] sm:$0xff]
    %v86 = vld [vmem:[#allocation2 + $0x168] sm:$0xff]
    %v87 = vld [vmem:[#allocation2 + $0x170] sm:$0xff]
    %v88 = vld [vmem:[#allocation2 + $0x178] sm:$0xff]
    %v89 = vld [vmem:[%s2] sm:$0x3]
    %v91 = vperm.slane %v89, 0
    %v92 = vperm.slane %v89, 1
    %v99 = vunpack.c.l.b16 %v37
    %v100 = vunpack.c.h.b16 %v37
    %v101 = vunpack.c.l.b16 %v38
    %v102 = vunpack.c.l.b16 %v39
    %v103 = vunpack.c.h.b16 %v39
    %v104 = vunpack.c.l.b16 %v40
    %v105 = vpack.c.b16 %v102, %v99
    %v106 = vpack.c.b16 %v103, %v100
    %v107 = vpack.c.b16 %v104, %v101
    %v159 = vunpack.c.l.b16 %v41
    %v160 = vunpack.c.h.b16 %v41
    %v161 = vunpack.c.l.b16 %v42
    %v162 = vunpack.c.h.b16 %v42
    %v163 = vunpack.c.l.b16 %v43
    %v164 = vunpack.c.h.b16 %v43
    %v165 = vunpack.c.l.b16 %v44
    %v166 = vunpack.c.h.b16 %v44
    %v167 = vunpack.c.l.b16 %v45
    %v168 = vunpack.c.h.b16 %v45
    %v169 = vunpack.c.l.b16 %v46
    %v170 = vunpack.c.h.b16 %v46
    %v171 = vunpack.c.l.b16 %v47
    %v172 = vunpack.c.h.b16 %v47
    %v173 = vunpack.c.l.b16 %v48
    %v174 = vunpack.c.h.b16 %v48
    %v175 = vunpack.c.l.b16 %v49
    %v176 = vunpack.c.h.b16 %v49
    %v177 = vunpack.c.l.b16 %v50
    %v178 = vunpack.c.h.b16 %v50
    %v179 = vunpack.c.l.b16 %v51
    %v180 = vunpack.c.h.b16 %v51
    %v181 = vunpack.c.l.b16 %v52
    %v182 = vunpack.c.h.b16 %v52
    %v183 = vunpack.c.l.b16 %v53
    %v184 = vunpack.c.h.b16 %v53
    %v185 = vunpack.c.l.b16 %v54
    %v186 = vunpack.c.h.b16 %v54
    %v187 = vunpack.c.l.b16 %v55
    %v188 = vunpack.c.h.b16 %v55
    %v189 = vunpack.c.l.b16 %v56
    %v190 = vunpack.c.h.b16 %v56
    %v191 = vunpack.c.l.b16 %v57
    %v192 = vunpack.c.h.b16 %v57
    %v193 = vunpack.c.l.b16 %v58
    %v194 = vunpack.c.h.b16 %v58
    %v195 = vunpack.c.l.b16 %v59
    %v196 = vunpack.c.h.b16 %v59
    %v197 = vunpack.c.l.b16 %v60
    %v198 = vunpack.c.h.b16 %v60
    %v199 = vunpack.c.l.b16 %v61
    %v200 = vunpack.c.h.b16 %v61
    %v201 = vunpack.c.l.b16 %v62
    %v202 = vunpack.c.h.b16 %v62
    %v203 = vunpack.c.l.b16 %v63
    %v204 = vunpack.c.h.b16 %v63
    %v205 = vunpack.c.l.b16 %v64
    %v206 = vunpack.c.h.b16 %v64
    %v207 = vunpack.c.l.b16 %v65
    %v208 = vunpack.c.h.b16 %v65
    %v209 = vunpack.c.l.b16 %v66
    %v210 = vunpack.c.h.b16 %v66
    %v211 = vunpack.c.l.b16 %v67
    %v212 = vunpack.c.h.b16 %v67
    %v213 = vunpack.c.l.b16 %v68
    %v214 = vunpack.c.h.b16 %v68
    %v215 = vunpack.c.l.b16 %v69
    %v216 = vunpack.c.h.b16 %v69
    %v217 = vunpack.c.l.b16 %v70
    %v218 = vunpack.c.h.b16 %v70
    %v219 = vunpack.c.l.b16 %v71
    %v220 = vunpack.c.h.b16 %v71
    %v221 = vunpack.c.l.b16 %v72
    %v222 = vunpack.c.h.b16 %v72
    %v223 = vunpack.c.l.b16 %v73
    %v224 = vunpack.c.h.b16 %v73
    %v225 = vunpack.c.l.b16 %v74
    %v226 = vunpack.c.h.b16 %v74
    %v227 = vunpack.c.l.b16 %v75
    %v228 = vunpack.c.h.b16 %v75
    %v229 = vunpack.c.l.b16 %v76
    %v230 = vunpack.c.h.b16 %v76
    %v231 = vunpack.c.l.b16 %v77
    %v232 = vunpack.c.h.b16 %v77
    %v233 = vunpack.c.l.b16 %v78
    %v234 = vunpack.c.h.b16 %v78
    %v235 = vunpack.c.l.b16 %v79
    %v236 = vunpack.c.h.b16 %v79
    %v237 = vunpack.c.l.b16 %v80
    %v238 = vunpack.c.h.b16 %v80
    %v239 = vunpack.c.l.b16 %v81
    %v240 = vunpack.c.h.b16 %v81
    %v241 = vunpack.c.l.b16 %v82
    %v242 = vunpack.c.h.b16 %v82
    %v243 = vunpack.c.l.b16 %v83
    %v244 = vunpack.c.h.b16 %v83
    %v245 = vunpack.c.l.b16 %v84
    %v246 = vunpack.c.h.b16 %v84
    %v247 = vunpack.c.l.b16 %v85
    %v248 = vunpack.c.h.b16 %v85
    %v249 = vunpack.c.l.b16 %v86
    %v250 = vunpack.c.h.b16 %v86
    %v251 = vunpack.c.l.b16 %v87
    %v252 = vunpack.c.h.b16 %v87
    %v253 = vunpack.c.l.b16 %v88
    %v254 = vunpack.c.h.b16 %v88
    %v255 = vpack.c.b16 %v161, %v159
    %v256 = vpack.c.b16 %v162, %v160
    %v257 = vpack.c.b16 %v165, %v163
    %v258 = vpack.c.b16 %v166, %v164
    %v259 = vpack.c.b16 %v169, %v167
    %v260 = vpack.c.b16 %v170, %v168
    %v261 = vpack.c.b16 %v173, %v171
    %v262 = vpack.c.b16 %v174, %v172
    %v263 = vpack.c.b16 %v177, %v175
    %v264 = vpack.c.b16 %v178, %v176
    %v265 = vpack.c.b16 %v181, %v179
    %v266 = vpack.c.b16 %v182, %v180
    %v267 = vpack.c.b16 %v185, %v183
    %v268 = vpack.c.b16 %v186, %v184
    %v269 = vpack.c.b16 %v189, %v187
    %v270 = vpack.c.b16 %v190, %v188
    %v271 = vpack.c.b16 %v193, %v191
    %v272 = vpack.c.b16 %v194, %v192
    %v273 = vpack.c.b16 %v197, %v195
    %v274 = vpack.c.b16 %v198, %v196
    %v275 = vpack.c.b16 %v201, %v199
    %v276 = vpack.c.b16 %v202, %v200
    %v277 = vpack.c.b16 %v205, %v203
    %v278 = vpack.c.b16 %v206, %v204
    %v279 = vpack.c.b16 %v209, %v207
    %v280 = vpack.c.b16 %v210, %v208
    %v281 = vpack.c.b16 %v213, %v211
    %v282 = vpack.c.b16 %v214, %v212
    %v283 = vpack.c.b16 %v217, %v215
    %v284 = vpack.c.b16 %v218, %v216
    %v285 = vpack.c.b16 %v221, %v219
    %v286 = vpack.c.b16 %v222, %v220
    %v287 = vpack.c.b16 %v225, %v223
    %v288 = vpack.c.b16 %v226, %v224
    %v289 = vpack.c.b16 %v229, %v227
    %v290 = vpack.c.b16 %v230, %v228
    %v291 = vpack.c.b16 %v233, %v231
    %v292 = vpack.c.b16 %v234, %v232
    %v293 = vpack.c.b16 %v237, %v235
    %v294 = vpack.c.b16 %v238, %v236
    %v295 = vpack.c.b16 %v241, %v239
    %v296 = vpack.c.b16 %v242, %v240
    %v297 = vpack.c.b16 %v245, %v243
    %v298 = vpack.c.b16 %v246, %v244
    %v299 = vpack.c.b16 %v249, %v247
    %v300 = vpack.c.b16 %v250, %v248
    %v301 = vpack.c.b16 %v253, %v251
    %v302 = vpack.c.b16 %v254, %v252
    %351 = vmatpush.bf16.msra.mxu0 %v269
    %352 = vmatpush.bf16.msra.mxu0 %v267
    %353 = vmatpush.bf16.msra.mxu0 %v265
    %354 = vmatpush.bf16.msra.mxu0 %v263
    %355 = vmatpush.bf16.msra.mxu0 %v261
    %356 = vmatpush.bf16.msra.mxu0 %v259
    %357 = vmatpush.bf16.msra.mxu0 %v257
    %358 = vmatpush.bf16.msra.mxu0 %v255
    %359 = vmatmul.bf16.gmra.mxu0 %v105
    %v360 = vpop.f32.mrf.mxu0
    %v361 = vadd.f32 %v91, %v360
    %v362 = vpop.f32.mrf.mxu0
    %v363 = vadd.f32 %v91, %v362
    %364 = vdwg.mxu0
    %365 = vmatpush.bf16.msra.mxu0 %v285
    %366 = vmatpush.bf16.msra.mxu0 %v283
    %367 = vmatpush.bf16.msra.mxu0 %v281
    %368 = vmatpush.bf16.msra.mxu0 %v279
    %369 = vmatpush.bf16.msra.mxu0 %v277
    %370 = vmatpush.bf16.msra.mxu0 %v275
    %371 = vmatpush.bf16.msra.mxu0 %v273
    %372 = vmatpush.bf16.msra.mxu0 %v271
    %373 = vmatmul.bf16.gmra.mxu0 %v106
    %v374 = vpop.f32.mrf.mxu0
    %v375 = vadd.f32 %v361, %v374
    %v376 = vpop.f32.mrf.mxu0
    %v377 = vadd.f32 %v363, %v376
    %378 = vdwg.mxu0
    %379 = vmatpush.bf16.msra.mxu0 %v301
    %380 = vmatpush.bf16.msra.mxu0 %v299
    %381 = vmatpush.bf16.msra.mxu0 %v297
    %382 = vmatpush.bf16.msra.mxu0 %v295
    %383 = vmatpush.bf16.msra.mxu0 %v293
    %384 = vmatpush.bf16.msra.mxu0 %v291
    %385 = vmatpush.bf16.msra.mxu0 %v289
    %386 = vmatpush.bf16.msra.mxu0 %v287
    %387 = vmatmul.bf16.gmra.mxu0 %v107
    %v388 = vpop.f32.mrf.mxu0
    %v389 = vadd.f32 %v375, %v388
    %v390 = vpop.f32.mrf.mxu0
    %v391 = vadd.f32 %v377, %v390
    %392 = vdwg.mxu0
    %393 = vmatpush.bf16.msra.mxu0 %v270
    %394 = vmatpush.bf16.msra.mxu0 %v268
    %395 = vmatpush.bf16.msra.mxu0 %v266
    %396 = vmatpush.bf16.msra.mxu0 %v264
    %397 = vmatpush.bf16.msra.mxu0 %v262
    %398 = vmatpush.bf16.msra.mxu0 %v260
    %399 = vmatpush.bf16.msra.mxu0 %v258
    %400 = vmatpush.bf16.msra.mxu0 %v256
    %401 = vmatmul.bf16.gmra.mxu0 %v105
    %v402 = vpop.f32.mrf.mxu0
    %v403 = vadd.f32 %v92, %v402
    %v404 = vpop.f32.mrf.mxu0
    %v405 = vadd.f32 %v92, %v404
    %406 = vdwg.mxu0
    %407 = vmatpush.bf16.msra.mxu0 %v286
    %408 = vmatpush.bf16.msra.mxu0 %v284
    %409 = vmatpush.bf16.msra.mxu0 %v282
    %410 = vmatpush.bf16.msra.mxu0 %v280
    %411 = vmatpush.bf16.msra.mxu0 %v278
    %412 = vmatpush.bf16.msra.mxu0 %v276
    %413 = vmatpush.bf16.msra.mxu0 %v274
    %414 = vmatpush.bf16.msra.mxu0 %v272
    %415 = vmatmul.bf16.gmra.mxu0 %v106
    %v416 = vpop.f32.mrf.mxu0
    %v417 = vadd.f32 %v403, %v416
    %v418 = vpop.f32.mrf.mxu0
    %v419 = vadd.f32 %v405, %v418
    %420 = vdwg.mxu0
    %421 = vmatpush.bf16.msra.mxu0 %v302
    %422 = vmatpush.bf16.msra.mxu0 %v300
    %423 = vmatpush.bf16.msra.mxu0 %v298
    %424 = vmatpush.bf16.msra.mxu0 %v296
    %425 = vmatpush.bf16.msra.mxu0 %v294
    %426 = vmatpush.bf16.msra.mxu0 %v292
    %427 = vmatpush.bf16.msra.mxu0 %v290
    %428 = vmatpush.bf16.msra.mxu0 %v288
    %429 = vmatmul.bf16.gmra.mxu0 %v107
    %v430 = vpop.f32.mrf.mxu0
    %v431 = vadd.f32 %v417, %v430
    %v432 = vpop.f32.mrf.mxu0
    %v433 = vadd.f32 %v419, %v432
    %434 = vdwg.mxu0
    %v435 = vmax.f32 %v389, 0.0
    %v436 = vmax.f32 %v431, 0.0
    %v437 = vmax.f32 %v391, 0.0
    %v438 = vmax.f32 %v433, 0.0
    %v439 = vpack.c.bf16 %v437, %v435
    %v440 = vpack.c.bf16 %v438, %v436
    %v441 = vld [vmem:[%s3] sm:$0xf]
    %v442 = vld [vmem:[%s3 + $0x4] sm:$0xf]
    %v443 = vld [vmem:[%s3 + $0x8] sm:$0xf]
    %v444 = vld [vmem:[%s3 + $0xc] sm:$0xf]
    %v445 = vld [vmem:[%s3 + $0x10] sm:$0xf]
    %v446 = vld [vmem:[%s3 + $0x14] sm:$0xf]
    %v447 = vld [vmem:[%s3 + $0x18] sm:$0xf]
    %v448 = vld [vmem:[%s3 + $0x1c] sm:$0xf]
    %v449 = vld [vmem:[%s3 + $0x20] sm:$0xf]
    %v450 = vld [vmem:[%s3 + $0x24] sm:$0xf]
    %v451 = vld [vmem:[%s3 + $0x28] sm:$0xf]
    %v452 = vld [vmem:[%s3 + $0x2c] sm:$0xf]
    %v453 = vld [vmem:[%s3 + $0x30] sm:$0xf]
    %v454 = vld [vmem:[%s3 + $0x34] sm:$0xf]
    %v455 = vld [vmem:[%s3 + $0x38] sm:$0xf]
    %v456 = vld [vmem:[%s3 + $0x3c] sm:$0xf]
    %v457 = vld [vmem:[%s3 + $0x40] sm:$0xf]
    %v458 = vld [vmem:[%s3 + $0x44] sm:$0xf]
    %v459 = vld [vmem:[%s3 + $0x48] sm:$0xf]
    %v460 = vld [vmem:[%s3 + $0x4c] sm:$0xf]
    %v461 = vld [vmem:[%s3 + $0x50] sm:$0xf]
    %v462 = vld [vmem:[%s3 + $0x54] sm:$0xf]
    %v463 = vld [vmem:[%s3 + $0x58] sm:$0xf]
    %v464 = vld [vmem:[%s3 + $0x5c] sm:$0xf]
    %v465 = vld [vmem:[%s3 + $0x60] sm:$0xf]
    %v466 = vld [vmem:[%s3 + $0x64] sm:$0xf]
    %v467 = vld [vmem:[%s3 + $0x68] sm:$0xf]
    %v468 = vld [vmem:[%s3 + $0x6c] sm:$0xf]
    %v469 = vld [vmem:[%s3 + $0x70] sm:$0xf]
    %v470 = vld [vmem:[%s3 + $0x74] sm:$0xf]
    %v471 = vld [vmem:[%s3 + $0x78] sm:$0xf]
    %v472 = vld [vmem:[%s3 + $0x7c] sm:$0xf]
    %v473 = vld [vmem:[%s4] sm:$0x1]
    %v475 = vperm.slane %v473, 0
    %v509 = vunpack.c.l.b16 %v441
    %v510 = vunpack.c.l.b16 %v442
    %v511 = vunpack.c.l.b16 %v443
    %v512 = vunpack.c.l.b16 %v444
    %v513 = vunpack.c.l.b16 %v445
    %v514 = vunpack.c.l.b16 %v446
    %v515 = vunpack.c.l.b16 %v447
    %v516 = vunpack.c.l.b16 %v448
    %v517 = vunpack.c.l.b16 %v449
    %v518 = vunpack.c.l.b16 %v450
    %v519 = vunpack.c.l.b16 %v451
    %v520 = vunpack.c.l.b16 %v452
    %v521 = vunpack.c.l.b16 %v453
    %v522 = vunpack.c.l.b16 %v454
    %v523 = vunpack.c.l.b16 %v455
    %v524 = vunpack.c.l.b16 %v456
    %v525 = vunpack.c.l.b16 %v457
    %v526 = vunpack.c.l.b16 %v458
    %v527 = vunpack.c.l.b16 %v459
    %v528 = vunpack.c.l.b16 %v460
    %v529 = vunpack.c.l.b16 %v461
    %v530 = vunpack.c.l.b16 %v462
    %v531 = vunpack.c.l.b16 %v463
    %v532 = vunpack.c.l.b16 %v464
    %v533 = vunpack.c.l.b16 %v465
    %v534 = vunpack.c.l.b16 %v466
    %v535 = vunpack.c.l.b16 %v467
    %v536 = vunpack.c.l.b16 %v468
    %v537 = vunpack.c.l.b16 %v469
    %v538 = vunpack.c.l.b16 %v470
    %v539 = vunpack.c.l.b16 %v471
    %v540 = vunpack.c.l.b16 %v472
    %v541 = vpack.c.b16 %v510, %v509
    %v542 = vpack.c.b16 %v512, %v511
    %v543 = vpack.c.b16 %v514, %v513
    %v544 = vpack.c.b16 %v516, %v515
    %v545 = vpack.c.b16 %v518, %v517
    %v546 = vpack.c.b16 %v520, %v519
    %v547 = vpack.c.b16 %v522, %v521
    %v548 = vpack.c.b16 %v524, %v523
    %v549 = vpack.c.b16 %v526, %v525
    %v550 = vpack.c.b16 %v528, %v527
    %v551 = vpack.c.b16 %v530, %v529
    %v552 = vpack.c.b16 %v532, %v531
    %v553 = vpack.c.b16 %v534, %v533
    %v554 = vpack.c.b16 %v536, %v535
    %v555 = vpack.c.b16 %v538, %v537
    %v556 = vpack.c.b16 %v540, %v539
    %573 = vmatpush.bf16.msra.mxu0 %v548
    %574 = vmatpush.bf16.msra.mxu0 %v547
    %575 = vmatpush.bf16.msra.mxu0 %v546
    %576 = vmatpush.bf16.msra.mxu0 %v545
    %577 = vmatpush.bf16.msra.mxu0 %v544
    %578 = vmatpush.bf16.msra.mxu0 %v543
    %579 = vmatpush.bf16.msra.mxu0 %v542
    %580 = vmatpush.bf16.msra.mxu0 %v541
    %581 = vmatmul.bf16.gmra.mxu0 %v439
    %v582 = vpop.f32.mrf.mxu0
    %v583 = vadd.f32 %v475, %v582
    %v584 = vpop.f32.mrf.mxu0
    %v585 = vadd.f32 %v475, %v584
    %586 = vdwg.mxu0
    %587 = vmatpush.bf16.msra.mxu0 %v556
    %588 = vmatpush.bf16.msra.mxu0 %v555
    %589 = vmatpush.bf16.msra.mxu0 %v554
    %590 = vmatpush.bf16.msra.mxu0 %v553
    %591 = vmatpush.bf16.msra.mxu0 %v552
    %592 = vmatpush.bf16.msra.mxu0 %v551
    %593 = vmatpush.bf16.msra.mxu0 %v550
    %594 = vmatpush.bf16.msra.mxu0 %v549
    %595 = vmatmul.bf16.gmra.mxu0 %v440
    %v596 = vpop.f32.mrf.mxu0
    %v597 = vadd.f32 %v583, %v596
    %v598 = vpop.f32.mrf.mxu0
    %v599 = vadd.f32 %v585, %v598
    %600 = vdwg.mxu0
    %vm601 = vcmask 64512
    %602 = vst.msk [vmem:[#allocation5] sm:$0xff] %vm601, %v597
    %603 = vst.msk [vmem:[#allocation5 + $0x8] sm:$0xff] %vm601, %v599
    // Predicated region
    $region26: #{tpu_custom_call.1} parent=1 // pred_check
      _
    $region27: #{tpu_custom_call.1} parent=1 // pred_check_branch
      %605 = sbr.rel (0) target = $region29
    $region28: #{tpu_custom_call.1} parent=1 // pred_region
      %607 = vsyncadd [#allocation4], 128
      %s608 = sshll.u32 [#allocation5], 4
      %s609 = int_to_ptr.vmem [resolvable:$true] %s608
      %s610 = sshll.u32 %s5, 4
      %s611 = int_to_ptr.hbm [resolvable:$true] %s610
      %616 = dma.vmem_to_hbm [thread:$0]  %s609, 128, %s611, [#allocation4], 128, 128, 8
    $region29: #{tpu_custom_call.1} parent=1 // pred_fallthru
      _
    // Predicated region
    $region30: #{tpu_custom_call.1} parent=1 // pred_check
      _
    $region31: #{tpu_custom_call.1} parent=1 // pred_check_branch
      %618 = sbr.rel (0) target = $region33
    $region32: #{tpu_custom_call.1} parent=1 // pred_region
      %620 = dma.done [#allocation4], 256
    $region33: #{tpu_custom_call.1} parent=1 // pred_fallthru
      _
    %621 = vsyncpa [#allocation3], 1
    %622 = vsyncpa [#allocation4], 1

</llo_original>
